<compile_context>
chip_gen: v6e
topology: v6e:2x2x1
jax: 0.10.0
libtpu: 0.0.40
codegen_flags: <defaults>
</compile_context>

<pallas_src>
import math

import jax
import jax.numpy as jnp
from jax.experimental import pallas as pl
from jax.experimental.pallas import tpu as pltpu


def _time_mlp_kernel(t_ref, trig_ref, w1_ref, b1_ref, w2_ref, b2_ref, o_ref):
    # Sinusoidal embedding without concatenate:
    #   cat(sin(t*f), cos(t*f)) == sin(t*[f, f] + [0, pi/2])
    # trig_ref row 0 = [f, f], row 1 = [0, pi/2]  (both full lane width)
    t = t_ref[...]                                  # (TB, 1)
    trig = trig_ref[...]                            # (2, dim)
    freqs = trig[0:1, :]                            # (1, dim)
    phase = trig[1:2, :]                            # (1, dim)
    emb = jnp.sin(t * freqs + phase)                # (TB, dim)

    # linear1 + exact GELU (PyTorch nn.GELU default uses erf)
    h = jnp.dot(emb, w1_ref[...], preferred_element_type=jnp.float32) + b1_ref[...]
    h = 0.5 * h * (1.0 + jax.lax.erf(h * (1.0 / math.sqrt(2.0))))

    # linear2
    o = jnp.dot(h, w2_ref[...], preferred_element_type=jnp.float32) + b2_ref[...]
    o_ref[...] = o.astype(o_ref.dtype)


def time_mlp(t, freqs, w1, b1, w2, b2, *, max_batch_tile=4096):
    """Time_MLP forward. t: (B,), freqs: (1, dim//2)."""
    B = t.shape[0]
    dim = w2.shape[1]
    hidden = w1.shape[1]
    half = freqs.shape[-1]

    # ---- wrapper-side glue (runs once) -------------------------------------
    # Fused (2, dim) trig table: row 0 = [f, f], row 1 = [0, pi/2].
    freqs_row = freqs.reshape(1, half).astype(jnp.float32)
    trig = jnp.concatenate(
        [
            jnp.concatenate([freqs_row, freqs_row], axis=-1),
            jnp.concatenate(
                [jnp.zeros((1, half), jnp.float32),
                 jnp.full((1, half), 0.5 * math.pi, jnp.float32)], axis=-1),
        ],
        axis=0,
    )  # (2, dim)

    # ---- batch tiling -------------------------------------------------------
    # Round the batch to the 8-sublane granule, pick as large a tile as allowed
    # (per-step fixed overhead ~0.35us, so bigger is better), but keep >= 2
    # grid steps when the batch is big enough that each step still has >= 512
    # rows, so ("parallel",) can shard across v7x's two TensorCores.
    B8 = pl.cdiv(B, 8) * 8
    tb_cap = max(8, (max_batch_tile // 8) * 8)
    n_steps = pl.cdiv(B8, tb_cap)
    if n_steps == 1 and B8 >= 2 * 512:
        n_steps = 2
    TB = pl.cdiv(pl.cdiv(B8, n_steps), 8) * 8
    Bp = n_steps * TB

    t2d = jnp.zeros((Bp, 1), jnp.float32).at[:B, 0].set(t.astype(jnp.float32))

    # ---- VMEM budget --------------------------------------------------------
    const_bytes = 4 * (trig.size + w1.size + b1.size + w2.size + b2.size)
    tile_bytes = 2 * 4 * TB * (1 + dim)          # double-buffered t / out tiles
    interm_bytes = 4 * TB * (dim + hidden)       # emb / h intermediates
    needed = 2 * const_bytes + tile_bytes + interm_bytes + (1 << 20)
    vmem_limit = int(min(64 * 1024 * 1024, max(32 * 1024 * 1024, needed)))

    cost = pl.CostEstimate(
        flops=4 * Bp * dim * hidden + 8 * Bp * hidden + 3 * Bp * dim,
        transcendentals=Bp * dim + Bp * hidden,
        bytes_accessed=4 * (t2d.size + trig.size + w1.size + b1.size
                            + w2.size + b2.size + Bp * dim),
    )

    def make_call(single_buffer_consts):
        if single_buffer_consts:
            # constants are revisited every step: single-buffer them
            def const_spec(a):
                return pl.BlockSpec(a.shape, lambda i: (0,) * a.ndim,
                                    pipeline_mode=pl.Buffered(1))
        else:
            def const_spec(a):
                return pl.BlockSpec(a.shape, lambda i: (0,) * a.ndim)

        def batch_spec(cols):
            return pl.BlockSpec((TB, cols), lambda i: (i, 0))

        return pl.pallas_call(
            _time_mlp_kernel,
            out_shape=jax.ShapeDtypeStruct((Bp, dim), jnp.float32),
            grid=(Bp // TB,),
            in_specs=[
                batch_spec(1),        # t (tiled / pipelined over batch)
                const_spec(trig),     # [f,f] / [0,pi/2] table (resident)
                const_spec(w1),
                const_spec(b1),
                const_spec(w2),
                const_spec(b2),
            ],
            out_specs=batch_spec(dim),
            compiler_params=pltpu.CompilerParams(
                dimension_semantics=("parallel",),
                vmem_limit_bytes=vmem_limit),
            cost_estimate=cost,
        )

    try:
        out = make_call(True)(t2d, trig, w1, b1, w2, b2)
        out = jax.block_until_ready(out)
    except Exception:
        # pl.Buffered(1) single-buffering not supported on this jax build;
        # fall back to default (double-buffered) constant specs.
        out = make_call(False)(t2d, trig, w1, b1, w2, b2)
    return out[:B]


def _reference(t, freqs_half, w1, b1, w2, b2):
    # Exact PyTorch semantics: cat(sin, cos) -> Linear -> erf-GELU -> Linear.
    emb = t[:, None] * freqs_half[None, :]
    emb = jnp.concatenate([jnp.sin(emb), jnp.cos(emb)], axis=-1)
    h = emb @ w1 + b1
    h = 0.5 * h * (1.0 + jax.lax.erf(h / jnp.sqrt(2.0)))
    return h @ w2 + b2


if __name__ == "__main__":
    dim = 32          # SinusoidalPosEmb / Time_MLP dim
    hidden = dim * 4  # 128

    half = dim // 2
    scale = math.log(10000.0) / (half - 1)
    freqs = jnp.exp(jnp.arange(half, dtype=jnp.float32) * -scale).reshape(1, half)

    key = jax.random.PRNGKey(0)
    kt, k1, kb1, k2, kb2, kt2 = jax.random.split(key, 6)

    # deterministic parameter init (shapes from nn.Linear(dim, 4*dim) /
    # nn.Linear(4*dim, dim)), stored pre-transposed for x @ W layout.
    w1 = jax.random.normal(k1, (dim, hidden), dtype=jnp.float32) * (1.0 / math.sqrt(dim))
    b1 = jax.random.normal(kb1, (1, hidden), dtype=jnp.float32) * 0.01
    w2 = jax.random.normal(k2, (hidden, dim), dtype=jnp.float32) * (1.0 / math.sqrt(hidden))
    b2 = jax.random.normal(kb2, (1, dim), dtype=jnp.float32) * 0.01

    # small check: B=8 -> single grid step
    B = 8
    t = jax.random.uniform(kt, (B,), dtype=jnp.float32) * 100.0
    out = jax.block_until_ready(time_mlp(t, freqs, w1, b1, w2, b2))
    ref = _reference(t, freqs.reshape(half), w1, b1, w2, b2)
    assert out.shape == (B, dim)
    assert jnp.allclose(out, ref, atol=1e-4, rtol=1e-4), "mismatch vs JAX reference (B=8)"

    # larger check: exercises batch padding, the multi-step grid and the
    # two-TensorCore split path (B8 >= 1024 -> 2 grid steps).  Slightly wider
    # tolerance covers the f32 sin(x+pi/2) range-reduction drift over more
    # samples.
    B2 = 1100
    t2 = jax.random.uniform(kt2, (B2,), dtype=jnp.float32) * 100.0
    out2 = jax.block_until_ready(time_mlp(t2, freqs, w1, b1, w2, b2))
    ref2 = _reference(t2, freqs.reshape(half), w1, b1, w2, b2)
    assert out2.shape == (B2, dim)
    assert jnp.allclose(out2, ref2, atol=2e-4, rtol=2e-4), "mismatch vs JAX reference (B=1100)"

    print("KERNEL_OK")
</pallas_src>

<mosaic_0001>
module attributes {stable_mosaic.version = 11 : i64} {
  func.func @_time_mlp_kernel(%arg0: i32, %arg1: memref<8x1xf32, #tpu.memory_space<vmem>>, %arg2: memref<2x32xf32, #tpu.memory_space<vmem>>, %arg3: memref<32x128xf32, #tpu.memory_space<vmem>>, %arg4: memref<1x128xf32, #tpu.memory_space<vmem>>, %arg5: memref<128x32xf32, #tpu.memory_space<vmem>>, %arg6: memref<1x32xf32, #tpu.memory_space<vmem>>, %arg7: memref<8x32xf32, #tpu.memory_space<vmem>>) attributes {dimension_semantics = [#tpu.dimension_semantics<parallel>], iteration_bounds = array<i64: 1>, scalar_prefetch = 0 : i64, scratch_operands = 0 : i64, tpu.core_type = #tpu.core_type<tc>, window_params = [{transform_indices = @transform_0, window_bounds = array<i64: 8, 1>}, {pipeline_mode = #tpu.pipeline_mode<synchronous>, transform_indices = @transform_1, window_bounds = array<i64: 2, 32>}, {pipeline_mode = #tpu.pipeline_mode<synchronous>, transform_indices = @transform_2, window_bounds = array<i64: 32, 128>}, {pipeline_mode = #tpu.pipeline_mode<synchronous>, transform_indices = @transform_3, window_bounds = array<i64: 1, 128>}, {pipeline_mode = #tpu.pipeline_mode<synchronous>, transform_indices = @transform_4, window_bounds = array<i64: 128, 32>}, {pipeline_mode = #tpu.pipeline_mode<synchronous>, transform_indices = @transform_5, window_bounds = array<i64: 1, 32>}, {transform_indices = @transform_6, window_bounds = array<i64: 8, 32>}]} {
    %c0 = arith.constant 0 : index
    %c0_0 = arith.constant 0 : index
    %0 = vector.load %arg1[%c0, %c0_0] : memref<8x1xf32, #tpu.memory_space<vmem>>, vector<8x1xf32>
    %c0_1 = arith.constant 0 : index
    %c0_2 = arith.constant 0 : index
    %1 = vector.load %arg2[%c0_1, %c0_2] : memref<2x32xf32, #tpu.memory_space<vmem>>, vector<2x32xf32>
    %2 = vector.extract_strided_slice %1 {offsets = [0, 0], sizes = [1, 32], strides = [1, 1]} : vector<2x32xf32> to vector<1x32xf32>
    %3 = vector.extract_strided_slice %1 {offsets = [1, 0], sizes = [1, 32], strides = [1, 1]} : vector<2x32xf32> to vector<1x32xf32>
    %4 = vector.broadcast %0 : vector<8x1xf32> to vector<8x32xf32>
    %5 = vector.broadcast %2 : vector<1x32xf32> to vector<8x32xf32>
    %6 = arith.mulf %4, %5 : vector<8x32xf32>
    %7 = vector.broadcast %3 : vector<1x32xf32> to vector<8x32xf32>
    %8 = arith.addf %6, %7 : vector<8x32xf32>
    %9 = math.sin %8 : vector<8x32xf32>
    %c0_3 = arith.constant 0 : index
    %c0_4 = arith.constant 0 : index
    %10 = vector.load %arg3[%c0_3, %c0_4] : memref<32x128xf32, #tpu.memory_space<vmem>>, vector<32x128xf32>
    %cst = arith.constant dense<0.000000e+00> : vector<8x128xf32>
    %11 = tpu.matmul %9, %10, %cst {dimension_numbers = #tpu.dot_dimension_numbers<[1], [0], [0], [1], [0, 0, 1, 1], [], []>} : vector<8x32xf32>, vector<32x128xf32>, vector<8x128xf32> -> vector<8x128xf32>
    %c0_5 = arith.constant 0 : index
    %c0_6 = arith.constant 0 : index
    %12 = vector.load %arg4[%c0_5, %c0_6] : memref<1x128xf32, #tpu.memory_space<vmem>>, vector<1x128xf32>
    %13 = vector.broadcast %12 : vector<1x128xf32> to vector<8x128xf32>
    %14 = arith.addf %11, %13 : vector<8x128xf32>
    %cst_7 = arith.constant 5.000000e-01 : f32
    %15 = vector.broadcast %cst_7 : f32 to vector<8x128xf32>
    %16 = arith.mulf %15, %14 : vector<8x128xf32>
    %cst_8 = arith.constant 0.707106769 : f32
    %17 = vector.broadcast %cst_8 : f32 to vector<8x128xf32>
    %18 = arith.mulf %14, %17 : vector<8x128xf32>
    %19 = math.erf %18 : vector<8x128xf32>
    %cst_9 = arith.constant 1.000000e+00 : f32
    %20 = vector.broadcast %cst_9 : f32 to vector<8x128xf32>
    %21 = arith.addf %20, %19 : vector<8x128xf32>
    %22 = arith.mulf %16, %21 : vector<8x128xf32>
    %c0_10 = arith.constant 0 : index
    %c0_11 = arith.constant 0 : index
    %23 = vector.load %arg5[%c0_10, %c0_11] : memref<128x32xf32, #tpu.memory_space<vmem>>, vector<128x32xf32>
    %cst_12 = arith.constant dense<0.000000e+00> : vector<8x32xf32>
    %24 = tpu.matmul %22, %23, %cst_12 {dimension_numbers = #tpu.dot_dimension_numbers<[1], [0], [0], [1], [0, 0, 1, 1], [], []>} : vector<8x128xf32>, vector<128x32xf32>, vector<8x32xf32> -> vector<8x32xf32>
    %c0_13 = arith.constant 0 : index
    %c0_14 = arith.constant 0 : index
    %25 = vector.load %arg6[%c0_13, %c0_14] : memref<1x32xf32, #tpu.memory_space<vmem>>, vector<1x32xf32>
    %26 = vector.broadcast %25 : vector<1x32xf32> to vector<8x32xf32>
    %27 = arith.addf %24, %26 : vector<8x32xf32>
    %c0_15 = arith.constant 0 : index
    %c0_16 = arith.constant 0 : index
    %28 = vector.load %arg7[%c0_15, %c0_16] : memref<8x32xf32, #tpu.memory_space<vmem>>, vector<8x32xf32>
    tpu.vector_store %arg7[%c0_15, %c0_16], %27 {strides = array<i32>} : memref<8x32xf32, #tpu.memory_space<vmem>>, vector<8x32xf32>,
    return
  }
  func.func @transform_0(%arg0: i32) -> (i32, i32) {
    %c0_i32 = arith.constant 0 : i32
    %c0_i32_0 = arith.constant 0 : i32
    return %arg0, %c0_i32 : i32, i32
  }
  func.func @transform_1(%arg0: i32) -> (i32, i32) {
    %c0_i32 = arith.constant 0 : i32
    %c0_i32_0 = arith.constant 0 : i32
    %c0_i32_1 = arith.constant 0 : i32
    return %c0_i32, %c0_i32_0 : i32, i32
  }
  func.func @transform_2(%arg0: i32) -> (i32, i32) {
    %c0_i32 = arith.constant 0 : i32
    %c0_i32_0 = arith.constant 0 : i32
    %c0_i32_1 = arith.constant 0 : i32
    return %c0_i32, %c0_i32_0 : i32, i32
  }
  func.func @transform_3(%arg0: i32) -> (i32, i32) {
    %c0_i32 = arith.constant 0 : i32
    %c0_i32_0 = arith.constant 0 : i32
    %c0_i32_1 = arith.constant 0 : i32
    return %c0_i32, %c0_i32_0 : i32, i32
  }
  func.func @transform_4(%arg0: i32) -> (i32, i32) {
    %c0_i32 = arith.constant 0 : i32
    %c0_i32_0 = arith.constant 0 : i32
    %c0_i32_1 = arith.constant 0 : i32
    return %c0_i32, %c0_i32_0 : i32, i32
  }
  func.func @transform_5(%arg0: i32) -> (i32, i32) {
    %c0_i32 = arith.constant 0 : i32
    %c0_i32_0 = arith.constant 0 : i32
    %c0_i32_1 = arith.constant 0 : i32
    return %c0_i32, %c0_i32_0 : i32, i32
  }
  func.func @transform_6(%arg0: i32) -> (i32, i32) {
    %c0_i32 = arith.constant 0 : i32
    %c0_i32_0 = arith.constant 0 : i32
    return %arg0, %c0_i32 : i32, i32
  }
}

module attributes {stable_mosaic.version = 11 : i64} {
  func.func @_time_mlp_kernel(%arg0: i32, %arg1: memref<8x1xf32, #tpu.memory_space<vmem>>, %arg2: memref<2x32xf32, #tpu.memory_space<vmem>>, %arg3: memref<32x128xf32, #tpu.memory_space<vmem>>, %arg4: memref<1x128xf32, #tpu.memory_space<vmem>>, %arg5: memref<128x32xf32, #tpu.memory_space<vmem>>, %arg6: memref<1x32xf32, #tpu.memory_space<vmem>>, %arg7: memref<8x32xf32, #tpu.memory_space<vmem>>) attributes {dimension_semantics = [#tpu.dimension_semantics<parallel>], iteration_bounds = array<i64: 1>, scalar_prefetch = 0 : i64, scratch_operands = 0 : i64, tpu.core_type = #tpu.core_type<tc>, window_params = [{transform_indices = @transform_0, window_bounds = array<i64: 8, 1>}, {pipeline_mode = #tpu.pipeline_mode<synchronous>, transform_indices = @transform_1, window_bounds = array<i64: 2, 32>}, {pipeline_mode = #tpu.pipeline_mode<synchronous>, transform_indices = @transform_2, window_bounds = array<i64: 32, 128>}, {pipeline_mode = #tpu.pipeline_mode<synchronous>, transform_indices = @transform_3, window_bounds = array<i64: 1, 128>}, {pipeline_mode = #tpu.pipeline_mode<synchronous>, transform_indices = @transform_4, window_bounds = array<i64: 128, 32>}, {pipeline_mode = #tpu.pipeline_mode<synchronous>, transform_indices = @transform_5, window_bounds = array<i64: 1, 32>}, {transform_indices = @transform_6, window_bounds = array<i64: 8, 32>}]} {
    %c0 = arith.constant 0 : index
    %c0_0 = arith.constant 0 : index
    %0 = vector.load %arg1[%c0, %c0_0] : memref<8x1xf32, #tpu.memory_space<vmem>>, vector<8x1xf32>
    %c0_1 = arith.constant 0 : index
    %c0_2 = arith.constant 0 : index
    %1 = vector.load %arg2[%c0_1, %c0_2] : memref<2x32xf32, #tpu.memory_space<vmem>>, vector<2x32xf32>
    %2 = vector.extract_strided_slice %1 {offsets = [0, 0], sizes = [1, 32], strides = [1, 1]} : vector<2x32xf32> to vector<1x32xf32>
    %3 = vector.extract_strided_slice %1 {offsets = [1, 0], sizes = [1, 32], strides = [1, 1]} : vector<2x32xf32> to vector<1x32xf32>
    %4 = vector.broadcast %0 : vector<8x1xf32> to vector<8x32xf32>
    %5 = vector.broadcast %2 : vector<1x32xf32> to vector<8x32xf32>
    %6 = arith.mulf %4, %5 : vector<8x32xf32>
    %7 = vector.broadcast %3 : vector<1x32xf32> to vector<8x32xf32>
    %8 = arith.addf %6, %7 : vector<8x32xf32>
    %9 = math.sin %8 : vector<8x32xf32>
    %c0_3 = arith.constant 0 : index
    %c0_4 = arith.constant 0 : index
    %10 = vector.load %arg3[%c0_3, %c0_4] : memref<32x128xf32, #tpu.memory_space<vmem>>, vector<32x128xf32>
    %cst = arith.constant dense<0.000000e+00> : vector<8x128xf32>
    %11 = tpu.matmul %9, %10, %cst {dimension_numbers = #tpu.dot_dimension_numbers<[1], [0], [0], [1], [0, 0, 1, 1], [], []>} : vector<8x32xf32>, vector<32x128xf32>, vector<8x128xf32> -> vector<8x128xf32>
    %c0_5 = arith.constant 0 : index
    %c0_6 = arith.constant 0 : index
    %12 = vector.load %arg4[%c0_5, %c0_6] : memref<1x128xf32, #tpu.memory_space<vmem>>, vector<1x128xf32>
    %13 = vector.broadcast %12 : vector<1x128xf32> to vector<8x128xf32>
    %14 = arith.addf %11, %13 : vector<8x128xf32>
    %cst_7 = arith.constant 5.000000e-01 : f32
    %15 = vector.broadcast %cst_7 : f32 to vector<8x128xf32>
    %16 = arith.mulf %15, %14 : vector<8x128xf32>
    %cst_8 = arith.constant 0.707106769 : f32
    %17 = vector.broadcast %cst_8 : f32 to vector<8x128xf32>
    %18 = arith.mulf %14, %17 : vector<8x128xf32>
    %19 = math.erf %18 : vector<8x128xf32>
    %cst_9 = arith.constant 1.000000e+00 : f32
    %20 = vector.broadcast %cst_9 : f32 to vector<8x128xf32>
    %21 = arith.addf %20, %19 : vector<8x128xf32>
    %22 = arith.mulf %16, %21 : vector<8x128xf32>
    %c0_10 = arith.constant 0 : index
    %c0_11 = arith.constant 0 : index
    %23 = vector.load %arg5[%c0_10, %c0_11] : memref<128x32xf32, #tpu.memory_space<vmem>>, vector<128x32xf32>
    %cst_12 = arith.constant dense<0.000000e+00> : vector<8x32xf32>
    %24 = tpu.matmul %22, %23, %cst_12 {dimension_numbers = #tpu.dot_dimension_numbers<[1], [0], [0], [1], [0, 0, 1, 1], [], []>} : vector<8x128xf32>, vector<128x32xf32>, vector<8x32xf32> -> vector<8x32xf32>
    %c0_13 = arith.constant 0 : index
    %c0_14 = arith.constant 0 : index
    %25 = vector.load %arg6[%c0_13, %c0_14] : memref<1x32xf32, #tpu.memory_space<vmem>>, vector<1x32xf32>
    %26 = vector.broadcast %25 : vector<1x32xf32> to vector<8x32xf32>
    %27 = arith.addf %24, %26 : vector<8x32xf32>
    %c0_15 = arith.constant 0 : index
    %c0_16 = arith.constant 0 : index
    %28 = vector.load %arg7[%c0_15, %c0_16] : memref<8x32xf32, #tpu.memory_space<vmem>>, vector<8x32xf32>
    tpu.vector_store %arg7[%c0_15, %c0_16], %27 {strides = array<i32>} : memref<8x32xf32, #tpu.memory_space<vmem>>, vector<8x32xf32>,
    return
  }
  func.func @transform_0(%arg0: i32) -> (i32, i32) {
    %c0_i32 = arith.constant 0 : i32
    %c0_i32_0 = arith.constant 0 : i32
    return %arg0, %c0_i32 : i32, i32
  }
  func.func @transform_1(%arg0: i32) -> (i32, i32) {
    %c0_i32 = arith.constant 0 : i32
    %c0_i32_0 = arith.constant 0 : i32
    %c0_i32_1 = arith.constant 0 : i32
    return %c0_i32, %c0_i32_0 : i32, i32
  }
  func.func @transform_2(%arg0: i32) -> (i32, i32) {
    %c0_i32 = arith.constant 0 : i32
    %c0_i32_0 = arith.constant 0 : i32
    %c0_i32_1 = arith.constant 0 : i32
    return %c0_i32, %c0_i32_0 : i32, i32
  }
  func.func @transform_3(%arg0: i32) -> (i32, i32) {
    %c0_i32 = arith.constant 0 : i32
    %c0_i32_0 = arith.constant 0 : i32
    %c0_i32_1 = arith.constant 0 : i32
    return %c0_i32, %c0_i32_0 : i32, i32
  }
  func.func @transform_4(%arg0: i32) -> (i32, i32) {
    %c0_i32 = arith.constant 0 : i32
    %c0_i32_0 = arith.constant 0 : i32
    %c0_i32_1 = arith.constant 0 : i32
    return %c0_i32, %c0_i32_0 : i32, i32
  }
  func.func @transform_5(%arg0: i32) -> (i32, i32) {
    %c0_i32 = arith.constant 0 : i32
    %c0_i32_0 = arith.constant 0 : i32
    %c0_i32_1 = arith.constant 0 : i32
    return %c0_i32, %c0_i32_0 : i32, i32
  }
  func.func @transform_6(%arg0: i32) -> (i32, i32) {
    %c0_i32 = arith.constant 0 : i32
    %c0_i32_0 = arith.constant 0 : i32
    return %arg0, %c0_i32 : i32, i32
  }
}

</mosaic_0001>

<llo_original>
// kernel: tpu_custom_call.1
$region0: #{tpu_custom_call.1}
  #allocation0 [shape = 'u32[]', space=smem, size = 0x4, offset = 0x4, fixed_abs, tag = 'smem constant byte address 0x4 - core index']
  #allocation1 [shape = 'u32[144,128]{1,0:T(1,128)}', space=vmem, size = 0x12000, scoped, tag = 'internal scratch']
  %s0 = inlined_call_operand.vmem [shape: f32[8,1], index: 0, kind: input, shape index: {}]
  %s1 = inlined_call_operand.vmem [shape: f32[2,32], index: 1, kind: input, shape index: {}]
  %s2 = inlined_call_operand.vmem [shape: f32[32,128], index: 2, kind: input, shape index: {}]
  %s3 = inlined_call_operand.vmem [shape: f32[1,128], index: 3, kind: input, shape index: {}]
  %s4 = inlined_call_operand.vmem [shape: f32[128,32], index: 4, kind: input, shape index: {}]
  %s5 = inlined_call_operand.vmem [shape: f32[1,32], index: 5, kind: input, shape index: {}]
  %s6 = inlined_call_operand.hbm [shape: f32[8,32], index: 6, kind: output, shape index: {}]
  %s7 = sld [smem:[#allocation0]]
  $region34: #{tpu_custom_call.1} parent=0
    _
  %s9 = ssub.s32 1, %s7
  %s10 = scalar_select 0, %s9, %s7
  $region1: #{tpu_custom_call.1} parent=0
    #allocation2 [shape = 'u8[4096]{0}', space=vmem, size = 0x1000, scoped, tag = 'output window, operand 0, single buffered']
    #allocation3 [shape = 's32[1]{0}', space=sflag, size = 0x4, scoped, tag = 'scoped memory for tpu_custom_call.1']
    %11 = vsyncpa [#allocation3], 0
    // Predicated region
    $region2: #{tpu_custom_call.1} parent=1 // pred_check
      _
    $region3: #{tpu_custom_call.1} parent=1 // pred_check_branch
      %13 = sbr.rel (0) target = $region5
    $region4: #{tpu_custom_call.1} parent=1 // pred_region
      _
    $region5: #{tpu_custom_call.1} parent=1 // pred_fallthru
      _
    // Predicated region
    $region6: #{tpu_custom_call.1} parent=1 // pred_check
      _
    $region7: #{tpu_custom_call.1} parent=1 // pred_check_branch
      %15 = sbr.rel (0) target = $region9
    $region8: #{tpu_custom_call.1} parent=1 // pred_region
      _
    $region9: #{tpu_custom_call.1} parent=1 // pred_fallthru
      _
    // Predicated region
    $region10: #{tpu_custom_call.1} parent=1 // pred_check
      _
    $region11: #{tpu_custom_call.1} parent=1 // pred_check_branch
      %17 = sbr.rel (0) target = $region13
    $region12: #{tpu_custom_call.1} parent=1 // pred_region
      _
    $region13: #{tpu_custom_call.1} parent=1 // pred_fallthru
      _
    // Predicated region
    $region14: #{tpu_custom_call.1} parent=1 // pred_check
      _
    $region15: #{tpu_custom_call.1} parent=1 // pred_check_branch
      %19 = sbr.rel (0) target = $region17
    $region16: #{tpu_custom_call.1} parent=1 // pred_region
      _
    $region17: #{tpu_custom_call.1} parent=1 // pred_fallthru
      _
    // Predicated region
    $region18: #{tpu_custom_call.1} parent=1 // pred_check
      _
    $region19: #{tpu_custom_call.1} parent=1 // pred_check_branch
      %21 = sbr.rel (0) target = $region21
    $region20: #{tpu_custom_call.1} parent=1 // pred_region
      _
    $region21: #{tpu_custom_call.1} parent=1 // pred_fallthru
      _
    // Predicated region
    $region22: #{tpu_custom_call.1} parent=1 // pred_check
      _
    $region23: #{tpu_custom_call.1} parent=1 // pred_check_branch
      %23 = sbr.rel (0) target = $region25
    $region24: #{tpu_custom_call.1} parent=1 // pred_region
      _
    $region25: #{tpu_custom_call.1} parent=1 // pred_fallthru
      _
    %v24 = vld [vmem:[%s0] sm:$0xff]
    %v25 = vld [vmem:[%s1] sm:$0x3]
    %27 = vset.pattern.permute.xlu0 0
    %28 = vperm.xlu0 %27, %v24
    %v29 = vpop.permute.xlu0 %28
    %v31 = vlaneseq
    %v32 = vshrl.u32 %v31, 7
    %v33 = vsub.s32 0, %v32
    %v34 = vrot.slane %v25, %v33
    %v35 = vmul.f32 %v29, %v34
    %v36 = vlaneseq
    %v37 = vshrl.u32 %v36, 7
    %v38 = vsub.s32 1, %v37
    %v39 = vrot.slane %v25, %v38
    %v40 = vadd.f32 %v35, %v39
    %v41 = vand.u32 2147483647, %v40
    %vm42 = vcmp.le.f32.partialorder %v41, 0.7853982
    %vm43 = vcmp.lt.s32.totalorder %v40, 0
    %v44 = vand.u32 %v40, 2139095040
    %v45 = vshrl.u32 %v44, 23
    %v46 = vsub.s32 %v45, 127
    %v47 = vand.u32 2147483647, %v40
    %v48 = vand.u32 %v47, 8388607
    %v49 = vor.u32 %v48, 8388608
    %v50 = vsub.s32 0, %v49
    %v51 = vadd.s32 %v46, 1
    %vm52 = vcmp.gt.s32.totalorder %v51, 0
    %v53 = vsel %vm52, %v51, 0
    %v54 = vshrl.u32 %v53, 5
    %v55 = vand.u32 %v53, 31
    %v56 = vsub.s32 32, %v55
    %v57 = vshrl.u32 683565275, %v56
    %v58 = vshll.u32 683565275, %v55
    %v59 = vshrl.u32 2475754826, %v56
    %v60 = vor.u32 %v58, %v59
    %v61 = vshll.u32 2475754826, %v55
    %v62 = vshrl.u32 2131351028, %v56
    %v63 = vor.u32 %v61, %v62
    %v64 = vshll.u32 2131351028, %v55
    %v65 = vshrl.u32 2102212464, %v56
    %v66 = vor.u32 %v64, %v65
    %v67 = vshll.u32 2102212464, %v55
    %v68 = vshrl.u32 920167782, %v56
    %v69 = vor.u32 %v67, %v68
    %v70 = vshll.u32 920167782, %v55
    %v71 = vshrl.u32 1326507024, %v56
    %v72 = vor.u32 %v70, %v71
    %vm73 = vcmp.lt.s32.totalorder %v54, 1
    %vm74 = vcmp.lt.s32.totalorder %v54, 2
    %vm75 = vcmp.lt.s32.totalorder %v54, 3
    %vm76 = vcmp.lt.s32.totalorder %v54, 4
    %v77 = vsel %vm73, %v57, %v60
    %v78 = vsel %vm76, %v66, 2102212464
    %v79 = vsel %vm75, %v63, %v78
    %v80 = vsel %vm74, %v77, %v79
    %v81 = vsel %vm73, %v60, %v63
    %v82 = vsel %vm76, %v69, 920167782
    %v83 = vsel %vm75, %v66, %v82
    %v84 = vsel %vm74, %v81, %v83
    %v85 = vsel %vm73, %v63, %v66
    %v86 = vsel %vm76, %v72, 1326507024
    %v87 = vsel %vm75, %v69, %v86
    %v88 = vsel %vm74, %v85, %v87
    %v89 = vshll.u32 %v49, 8
    %v90 = vmul.u32.u64.compose %v89, %v88
    %v91 = vextract.low.u32 %v90
    %v92 = vextract.high.u32 %v90
    %v93 = vmul.u32.u64.compose %v89, %v84
    %v94 = vextract.low.u32 %v93
    %v95 = vextract.high.u32 %v93
    %v96 = vmul.u32 %v89, %v80
    %v97 = vadd.s32 %v92, %v94
    %vm98 = vc.u32 %v92, %v94
    %v99 = vadd.s32 %v95, 1
    %v100 = vsel %vm98, %v99, %v95
    %v101 = vadd.s32 %v96, %v100
    %v102 = vadd.s32 %v101, 536870912
    %v103 = vshrl.u32 %v102, 30
    %v104 = vshll.u32 %v103, 30
    %v105 = vsub.s32 %v101, %v104
    %vm106 = vcmp.lt.s32.totalorder %v105, 0
    %v107 = vsub.s32 0, %v105
    %v108 = vsel %vm106, %v107, %v105
    %v109 = vclz %v108
    %v110 = vsub.s32 %v109, 2
    %vm111 = vcmp.gt.s32.totalorder 0, %v110
    %v112 = vsel %vm111, 0, %v110
    %v113 = vsub.s32 32, %v112
    %v114 = vshll.u32 %v105, %v112
    %v115 = vshrl.u32 %v97, %v113
    %v116 = vor.u32 %v114, %v115
    %v117 = vsub.s32 4294967266, %v112
    %v118 = vadd.s32 %v117, 127
    %v119 = vshll.u32 %v118, 23
    %v120 = vor.u32 4788187, %v119
    %v121 = vand.u32 2147483647, %v120
    %v123 = vcvt.s32.f32 %v116
    %v124 = vmul.f32 %v123, %v121
    %v125 = vxor.u32 %v124, 2147483648
    %v126 = vsel %vm43, %v125, %v124
    %v127 = vsub.s32 4, %v103
    %v128 = vsel %vm43, %v127, %v103
    %v129 = vsel %vm42, %v40, %v126
    %v130 = vsel %vm42, 0, %v128
    %v131 = vcosq.f32.pop %v129
    %v132 = vsinq.f32.pop %v129
    %vm133 = vweird.f32 %v40
    %v134 = vadd.s32 %v130, 3
    %v135 = vand.u32 %v134, 3
    %vm136 = vcmp.lt.s32.totalorder %v135, 2
    %vm137 = vcmp.eq.s32.totalorder %v135, 0
    %v138 = vxor.u32 %v132, 2147483648
    %v139 = vsel %vm137, %v131, %v138
    %vm140 = vcmp.eq.s32.totalorder %v135, 2
    %v141 = vxor.u32 %v131, 2147483648
    %v142 = vsel %vm140, %v141, %v132
    %v143 = vsel %vm136, %v139, %v142
    %v144 = vsel %vm133, nan, %v143
    %v145 = vld [vmem:[%s2] sm:$0xff]
    %v146 = vld [vmem:[%s2 + $0x8] sm:$0xff]
    %v147 = vld [vmem:[%s2 + $0x10] sm:$0xff]
    %v148 = vld [vmem:[%s2 + $0x18] sm:$0xff]
    %v149 = vld [vmem:[%s3] sm:$0x1]
    %v151 = vlaneseq
    %v152 = vshrl.u32 %v151, 7
    %v153 = vsub.s32 0, %v152
    %v154 = vrot.slane %v149, %v153
    %vm156 = vcmask 261120
    %v158 = vsel %vm156, %v144, 0
    %160 = vmatprep.subr.mxu0 0.0
    %161 = vmatpush1.msra.mxu0 0.0
    %162 = vmatprep.subr.mxu0 0.0
    %163 = vmatpush1.msra.mxu0 0.0
    %164 = vmatprep.subr.mxu0 0.0
    %165 = vmatpush1.msra.mxu0 0.0
    %166 = vmatprep.subr.mxu0 0.0
    %167 = vmatpush1.msra.mxu0 0.0
    %168 = vmatprep.subr.mxu0 0.0
    %169 = vmatpush1.msra.mxu0 0.0
    %170 = vmatprep.subr.mxu0 0.0
    %171 = vmatpush1.msra.mxu0 0.0
    %172 = vmatprep.subr.mxu0 0.0
    %173 = vmatpush1.msra.mxu0 0.0
    %174 = vmatprep.subr.mxu0 0.0
    %175 = vmatpush1.msra.mxu0 0.0
    %176 = vmatprep.subr.mxu0 0.0
    %177 = vmatpush1.msra.mxu0 0.0
    %178 = vmatprep.subr.mxu0 0.0
    %179 = vmatpush1.msra.mxu0 0.0
    %180 = vmatprep.subr.mxu0 0.0
    %181 = vmatpush1.msra.mxu0 0.0
    %182 = vmatprep.subr.mxu0 0.0
    %183 = vmatpush1.msra.mxu0 0.0
    %184 = vmatprep.subr.mxu0 0.0
    %185 = vmatpush1.msra.mxu0 %v148
    %186 = vmatprep.subr.mxu0 0.0
    %187 = vmatpush1.msra.mxu0 %v147
    %188 = vmatprep.subr.mxu0 0.0
    %189 = vmatpush1.msra.mxu0 %v146
    %190 = vmatprep.subr.mxu0 0.0
    %191 = vmatpush1.msra.mxu0 %v145
    %192 = vmatprep.subr.mxu0 0.0
    %193 = vmatpush2.msra.mxu0 0.0
    %194 = vmatprep.subr.mxu0 0.0
    %195 = vmatpush2.msra.mxu0 0.0
    %196 = vmatprep.subr.mxu0 0.0
    %197 = vmatpush2.msra.mxu0 0.0
    %198 = vmatprep.subr.mxu0 0.0
    %199 = vmatpush2.msra.mxu0 0.0
    %200 = vmatprep.subr.mxu0 0.0
    %201 = vmatpush2.msra.mxu0 0.0
    %202 = vmatprep.subr.mxu0 0.0
    %203 = vmatpush2.msra.mxu0 0.0
    %204 = vmatprep.subr.mxu0 0.0
    %205 = vmatpush2.msra.mxu0 0.0
    %206 = vmatprep.subr.mxu0 0.0
    %207 = vmatpush2.msra.mxu0 0.0
    %208 = vmatprep.subr.mxu0 0.0
    %209 = vmatpush2.msra.mxu0 0.0
    %210 = vmatprep.subr.mxu0 0.0
    %211 = vmatpush2.msra.mxu0 0.0
    %212 = vmatprep.subr.mxu0 0.0
    %213 = vmatpush2.msra.mxu0 0.0
    %214 = vmatprep.subr.mxu0 0.0
    %215 = vmatpush2.msra.mxu0 0.0
    %216 = vmatprep.subr.mxu0 0.0
    %217 = vmatpush2.msra.mxu0 0.0
    %218 = vmatprep.subr.mxu0 0.0
    %219 = vmatpush2.msra.mxu0 0.0
    %220 = vmatprep.subr.mxu0 0.0
    %221 = vmatpush2.msra.mxu0 0.0
    %222 = vmatprep.subr.mxu0 0.0
    %223 = vmatpush2.msra.mxu0 0.0
    %224 = vmatprep.mubr.f32.mxu0 0.0
    %225 = vmatmul.mubr.f32.gmra.mxu0 %v158
    %v226 = vpop.f32.mrf.mxu0
    %v227 = vadd.f32 %v154, %v226
    %v228 = vpop.f32.mrf.mxu0
    %229 = vdwg.mxu0
    %v230 = vmul.f32 %v227, 0.5
    %v231 = vmul.f32 %v227, 0.70710677
    %v232 = verf.f32.pop %v231
    %v233 = vadd.f32 %v232, 1.0
    %v234 = vmul.f32 %v230, %v233
    %v235 = vld [vmem:[%s4] sm:$0xff]
    %v236 = vld [vmem:[%s4 + $0x8] sm:$0xff]
    %v237 = vld [vmem:[%s4 + $0x10] sm:$0xff]
    %v238 = vld [vmem:[%s4 + $0x18] sm:$0xff]
    %v239 = vld [vmem:[%s4 + $0x20] sm:$0xff]
    %v240 = vld [vmem:[%s4 + $0x28] sm:$0xff]
    %v241 = vld [vmem:[%s4 + $0x30] sm:$0xff]
    %v242 = vld [vmem:[%s4 + $0x38] sm:$0xff]
    %v243 = vld [vmem:[%s4 + $0x40] sm:$0xff]
    %v244 = vld [vmem:[%s4 + $0x48] sm:$0xff]
    %v245 = vld [vmem:[%s4 + $0x50] sm:$0xff]
    %v246 = vld [vmem:[%s4 + $0x58] sm:$0xff]
    %v247 = vld [vmem:[%s4 + $0x60] sm:$0xff]
    %v248 = vld [vmem:[%s4 + $0x68] sm:$0xff]
    %v249 = vld [vmem:[%s4 + $0x70] sm:$0xff]
    %v250 = vld [vmem:[%s4 + $0x78] sm:$0xff]
    %v251 = vld [vmem:[%s5] sm:$0x1]
    %v253 = vlaneseq
    %v254 = vshrl.u32 %v253, 7
    %v255 = vsub.s32 0, %v254
    %v256 = vrot.slane %v251, %v255
    %258 = vmatprep.subr.mxu0 0.0
    %259 = vmatpush1.msra.mxu0 %v250
    %260 = vmatprep.subr.mxu0 0.0
    %261 = vmatpush1.msra.mxu0 %v249
    %262 = vmatprep.subr.mxu0 0.0
    %263 = vmatpush1.msra.mxu0 %v248
    %264 = vmatprep.subr.mxu0 0.0
    %265 = vmatpush1.msra.mxu0 %v247
    %266 = vmatprep.subr.mxu0 0.0
    %267 = vmatpush1.msra.mxu0 %v246
    %268 = vmatprep.subr.mxu0 0.0
    %269 = vmatpush1.msra.mxu0 %v245
    %270 = vmatprep.subr.mxu0 0.0
    %271 = vmatpush1.msra.mxu0 %v244
    %272 = vmatprep.subr.mxu0 0.0
    %273 = vmatpush1.msra.mxu0 %v243
    %274 = vmatprep.subr.mxu0 0.0
    %275 = vmatpush1.msra.mxu0 %v242
    %276 = vmatprep.subr.mxu0 0.0
    %277 = vmatpush1.msra.mxu0 %v241
    %278 = vmatprep.subr.mxu0 0.0
    %279 = vmatpush1.msra.mxu0 %v240
    %280 = vmatprep.subr.mxu0 0.0
    %281 = vmatpush1.msra.mxu0 %v239
    %282 = vmatprep.subr.mxu0 0.0
    %283 = vmatpush1.msra.mxu0 %v238
    %284 = vmatprep.subr.mxu0 0.0
    %285 = vmatpush1.msra.mxu0 %v237
    %286 = vmatprep.subr.mxu0 0.0
    %287 = vmatpush1.msra.mxu0 %v236
    %288 = vmatprep.subr.mxu0 0.0
    %289 = vmatpush1.msra.mxu0 %v235
    %290 = vmatprep.subr.mxu0 0.0
    %291 = vmatpush2.msra.mxu0 0.0
    %292 = vmatprep.subr.mxu0 0.0
    %293 = vmatpush2.msra.mxu0 0.0
    %294 = vmatprep.subr.mxu0 0.0
    %295 = vmatpush2.msra.mxu0 0.0
    %296 = vmatprep.subr.mxu0 0.0
    %297 = vmatpush2.msra.mxu0 0.0
    %298 = vmatprep.subr.mxu0 0.0
    %299 = vmatpush2.msra.mxu0 0.0
    %300 = vmatprep.subr.mxu0 0.0
    %301 = vmatpush2.msra.mxu0 0.0
    %302 = vmatprep.subr.mxu0 0.0
    %303 = vmatpush2.msra.mxu0 0.0
    %304 = vmatprep.subr.mxu0 0.0
    %305 = vmatpush2.msra.mxu0 0.0
    %306 = vmatprep.subr.mxu0 0.0
    %307 = vmatpush2.msra.mxu0 0.0
    %308 = vmatprep.subr.mxu0 0.0
    %309 = vmatpush2.msra.mxu0 0.0
    %310 = vmatprep.subr.mxu0 0.0
    %311 = vmatpush2.msra.mxu0 0.0
    %312 = vmatprep.subr.mxu0 0.0
    %313 = vmatpush2.msra.mxu0 0.0
    %314 = vmatprep.subr.mxu0 0.0
    %315 = vmatpush2.msra.mxu0 0.0
    %316 = vmatprep.subr.mxu0 0.0
    %317 = vmatpush2.msra.mxu0 0.0
    %318 = vmatprep.subr.mxu0 0.0
    %319 = vmatpush2.msra.mxu0 0.0
    %320 = vmatprep.subr.mxu0 0.0
    %321 = vmatpush2.msra.mxu0 0.0
    %322 = vmatprep.mubr.f32.mxu0 0.0
    %323 = vmatmul.mubr.f32.gmra.mxu0 %v234
    %v324 = vpop.f32.mrf.mxu0
    %v325 = vadd.f32 %v256, %v324
    %v326 = vpop.f32.mrf.mxu0
    %327 = vdwg.mxu0
    %328 = vst.msk [vmem:[#allocation2] sm:$0xff] %vm156, %v325
    // Predicated region
    $region26: #{tpu_custom_call.1} parent=1 // pred_check
      _
    $region27: #{tpu_custom_call.1} parent=1 // pred_check_branch
      %330 = sbr.rel (0) target = $region29
    $region28: #{tpu_custom_call.1} parent=1 // pred_region
      %s332 = ssub.s32 128, 128
      %333 = vsyncadd [#allocation3], %s332
      %s335 = sshll.u32 [#allocation2], 4
      %s336 = int_to_ptr.vmem [resolvable:$true] %s335
      %338 = dma.vmem_to_hbm [thread:$0]  %s336, 128, %s6, [#allocation3]
    $region29: #{tpu_custom_call.1} parent=1 // pred_fallthru
      _
    // Predicated region
    $region30: #{tpu_custom_call.1} parent=1 // pred_check
      _
    $region31: #{tpu_custom_call.1} parent=1 // pred_check_branch
      %340 = sbr.rel (0) target = $region33
    $region32: #{tpu_custom_call.1} parent=1 // pred_region
      %341 = dma.done [#allocation3], 128
    $region33: #{tpu_custom_call.1} parent=1 // pred_fallthru
      _
    %342 = vsyncpa [#allocation3], 1

// kernel: tpu_custom_call.1
$region0: #{tpu_custom_call.1}
  #allocation0 [shape = 'u32[]', space=smem, size = 0x4, offset = 0x4, fixed_abs, tag = 'smem constant byte address 0x4 - core index']
  #allocation1 [shape = 'u32[144,128]{1,0:T(1,128)}', space=vmem, size = 0x12000, scoped, tag = 'internal scratch']
  %s0 = inlined_call_operand.vmem [shape: f32[8,1], index: 0, kind: input, shape index: {}]
  %s1 = inlined_call_operand.vmem [shape: f32[2,32], index: 1, kind: input, shape index: {}]
  %s2 = inlined_call_operand.vmem [shape: f32[32,128], index: 2, kind: input, shape index: {}]
  %s3 = inlined_call_operand.vmem [shape: f32[1,128], index: 3, kind: input, shape index: {}]
  %s4 = inlined_call_operand.vmem [shape: f32[128,32], index: 4, kind: input, shape index: {}]
  %s5 = inlined_call_operand.vmem [shape: f32[1,32], index: 5, kind: input, shape index: {}]
  %s6 = inlined_call_operand.hbm [shape: f32[8,32], index: 6, kind: output, shape index: {}]
  %s7 = sld [smem:[#allocation0]]
  $region34: #{tpu_custom_call.1} parent=0
    _
  %s9 = ssub.s32 1, %s7
  %s10 = scalar_select 0, %s9, %s7
  $region1: #{tpu_custom_call.1} parent=0
    #allocation2 [shape = 'u8[4096]{0}', space=vmem, size = 0x1000, scoped, tag = 'output window, operand 0, single buffered']
    #allocation3 [shape = 's32[1]{0}', space=sflag, size = 0x4, scoped, tag = 'scoped memory for tpu_custom_call.1']
    %11 = vsyncpa [#allocation3], 0
    // Predicated region
    $region2: #{tpu_custom_call.1} parent=1 // pred_check
      _
    $region3: #{tpu_custom_call.1} parent=1 // pred_check_branch
      %13 = sbr.rel (0) target = $region5
    $region4: #{tpu_custom_call.1} parent=1 // pred_region
      _
    $region5: #{tpu_custom_call.1} parent=1 // pred_fallthru
      _
    // Predicated region
    $region6: #{tpu_custom_call.1} parent=1 // pred_check
      _
    $region7: #{tpu_custom_call.1} parent=1 // pred_check_branch
      %15 = sbr.rel (0) target = $region9
    $region8: #{tpu_custom_call.1} parent=1 // pred_region
      _
    $region9: #{tpu_custom_call.1} parent=1 // pred_fallthru
      _
    // Predicated region
    $region10: #{tpu_custom_call.1} parent=1 // pred_check
      _
    $region11: #{tpu_custom_call.1} parent=1 // pred_check_branch
      %17 = sbr.rel (0) target = $region13
    $region12: #{tpu_custom_call.1} parent=1 // pred_region
      _
    $region13: #{tpu_custom_call.1} parent=1 // pred_fallthru
      _
    // Predicated region
    $region14: #{tpu_custom_call.1} parent=1 // pred_check
      _
    $region15: #{tpu_custom_call.1} parent=1 // pred_check_branch
      %19 = sbr.rel (0) target = $region17
    $region16: #{tpu_custom_call.1} parent=1 // pred_region
      _
    $region17: #{tpu_custom_call.1} parent=1 // pred_fallthru
      _
    // Predicated region
    $region18: #{tpu_custom_call.1} parent=1 // pred_check
      _
    $region19: #{tpu_custom_call.1} parent=1 // pred_check_branch
      %21 = sbr.rel (0) target = $region21
    $region20: #{tpu_custom_call.1} parent=1 // pred_region
      _
    $region21: #{tpu_custom_call.1} parent=1 // pred_fallthru
      _
    // Predicated region
    $region22: #{tpu_custom_call.1} parent=1 // pred_check
      _
    $region23: #{tpu_custom_call.1} parent=1 // pred_check_branch
      %23 = sbr.rel (0) target = $region25
    $region24: #{tpu_custom_call.1} parent=1 // pred_region
      _
    $region25: #{tpu_custom_call.1} parent=1 // pred_fallthru
      _
    %v24 = vld [vmem:[%s0] sm:$0xff]
    %v25 = vld [vmem:[%s1] sm:$0x3]
    %27 = vset.pattern.permute.xlu0 0
    %28 = vperm.xlu0 %27, %v24
    %v29 = vpop.permute.xlu0 %28
    %v31 = vlaneseq
    %v32 = vshrl.u32 %v31, 7
    %v33 = vsub.s32 0, %v32
    %v34 = vrot.slane %v25, %v33
    %v35 = vmul.f32 %v29, %v34
    %v36 = vlaneseq
    %v37 = vshrl.u32 %v36, 7
    %v38 = vsub.s32 1, %v37
    %v39 = vrot.slane %v25, %v38
    %v40 = vadd.f32 %v35, %v39
    %v41 = vand.u32 2147483647, %v40
    %vm42 = vcmp.le.f32.partialorder %v41, 0.7853982
    %vm43 = vcmp.lt.s32.totalorder %v40, 0
    %v44 = vand.u32 %v40, 2139095040
    %v45 = vshrl.u32 %v44, 23
    %v46 = vsub.s32 %v45, 127
    %v47 = vand.u32 2147483647, %v40
    %v48 = vand.u32 %v47, 8388607
    %v49 = vor.u32 %v48, 8388608
    %v50 = vsub.s32 0, %v49
    %v51 = vadd.s32 %v46, 1
    %vm52 = vcmp.gt.s32.totalorder %v51, 0
    %v53 = vsel %vm52, %v51, 0
    %v54 = vshrl.u32 %v53, 5
    %v55 = vand.u32 %v53, 31
    %v56 = vsub.s32 32, %v55
    %v57 = vshrl.u32 683565275, %v56
    %v58 = vshll.u32 683565275, %v55
    %v59 = vshrl.u32 2475754826, %v56
    %v60 = vor.u32 %v58, %v59
    %v61 = vshll.u32 2475754826, %v55
    %v62 = vshrl.u32 2131351028, %v56
    %v63 = vor.u32 %v61, %v62
    %v64 = vshll.u32 2131351028, %v55
    %v65 = vshrl.u32 2102212464, %v56
    %v66 = vor.u32 %v64, %v65
    %v67 = vshll.u32 2102212464, %v55
    %v68 = vshrl.u32 920167782, %v56
    %v69 = vor.u32 %v67, %v68
    %v70 = vshll.u32 920167782, %v55
    %v71 = vshrl.u32 1326507024, %v56
    %v72 = vor.u32 %v70, %v71
    %vm73 = vcmp.lt.s32.totalorder %v54, 1
    %vm74 = vcmp.lt.s32.totalorder %v54, 2
    %vm75 = vcmp.lt.s32.totalorder %v54, 3
    %vm76 = vcmp.lt.s32.totalorder %v54, 4
    %v77 = vsel %vm73, %v57, %v60
    %v78 = vsel %vm76, %v66, 2102212464
    %v79 = vsel %vm75, %v63, %v78
    %v80 = vsel %vm74, %v77, %v79
    %v81 = vsel %vm73, %v60, %v63
    %v82 = vsel %vm76, %v69, 920167782
    %v83 = vsel %vm75, %v66, %v82
    %v84 = vsel %vm74, %v81, %v83
    %v85 = vsel %vm73, %v63, %v66
    %v86 = vsel %vm76, %v72, 1326507024
    %v87 = vsel %vm75, %v69, %v86
    %v88 = vsel %vm74, %v85, %v87
    %v89 = vshll.u32 %v49, 8
    %v90 = vmul.u32.u64.compose %v89, %v88
    %v91 = vextract.low.u32 %v90
    %v92 = vextract.high.u32 %v90
    %v93 = vmul.u32.u64.compose %v89, %v84
    %v94 = vextract.low.u32 %v93
    %v95 = vextract.high.u32 %v93
    %v96 = vmul.u32 %v89, %v80
    %v97 = vadd.s32 %v92, %v94
    %vm98 = vc.u32 %v92, %v94
    %v99 = vadd.s32 %v95, 1
    %v100 = vsel %vm98, %v99, %v95
    %v101 = vadd.s32 %v96, %v100
    %v102 = vadd.s32 %v101, 536870912
    %v103 = vshrl.u32 %v102, 30
    %v104 = vshll.u32 %v103, 30
    %v105 = vsub.s32 %v101, %v104
    %vm106 = vcmp.lt.s32.totalorder %v105, 0
    %v107 = vsub.s32 0, %v105
    %v108 = vsel %vm106, %v107, %v105
    %v109 = vclz %v108
    %v110 = vsub.s32 %v109, 2
    %vm111 = vcmp.gt.s32.totalorder 0, %v110
    %v112 = vsel %vm111, 0, %v110
    %v113 = vsub.s32 32, %v112
    %v114 = vshll.u32 %v105, %v112
    %v115 = vshrl.u32 %v97, %v113
    %v116 = vor.u32 %v114, %v115
    %v117 = vsub.s32 4294967266, %v112
    %v118 = vadd.s32 %v117, 127
    %v119 = vshll.u32 %v118, 23
    %v120 = vor.u32 4788187, %v119
    %v121 = vand.u32 2147483647, %v120
    %v123 = vcvt.s32.f32 %v116
    %v124 = vmul.f32 %v123, %v121
    %v125 = vxor.u32 %v124, 2147483648
    %v126 = vsel %vm43, %v125, %v124
    %v127 = vsub.s32 4, %v103
    %v128 = vsel %vm43, %v127, %v103
    %v129 = vsel %vm42, %v40, %v126
    %v130 = vsel %vm42, 0, %v128
    %v131 = vcosq.f32.pop %v129
    %v132 = vsinq.f32.pop %v129
    %vm133 = vweird.f32 %v40
    %v134 = vadd.s32 %v130, 3
    %v135 = vand.u32 %v134, 3
    %vm136 = vcmp.lt.s32.totalorder %v135, 2
    %vm137 = vcmp.eq.s32.totalorder %v135, 0
    %v138 = vxor.u32 %v132, 2147483648
    %v139 = vsel %vm137, %v131, %v138
    %vm140 = vcmp.eq.s32.totalorder %v135, 2
    %v141 = vxor.u32 %v131, 2147483648
    %v142 = vsel %vm140, %v141, %v132
    %v143 = vsel %vm136, %v139, %v142
    %v144 = vsel %vm133, nan, %v143
    %v145 = vld [vmem:[%s2] sm:$0xff]
    %v146 = vld [vmem:[%s2 + $0x8] sm:$0xff]
    %v147 = vld [vmem:[%s2 + $0x10] sm:$0xff]
    %v148 = vld [vmem:[%s2 + $0x18] sm:$0xff]
    %v149 = vld [vmem:[%s3] sm:$0x1]
    %v151 = vlaneseq
    %v152 = vshrl.u32 %v151, 7
    %v153 = vsub.s32 0, %v152
    %v154 = vrot.slane %v149, %v153
    %vm156 = vcmask 261120
    %v158 = vsel %vm156, %v144, 0
    %160 = vmatprep.subr.mxu0 0.0
    %161 = vmatpush1.msra.mxu0 0.0
    %162 = vmatprep.subr.mxu0 0.0
    %163 = vmatpush1.msra.mxu0 0.0
    %164 = vmatprep.subr.mxu0 0.0
    %165 = vmatpush1.msra.mxu0 0.0
    %166 = vmatprep.subr.mxu0 0.0
    %167 = vmatpush1.msra.mxu0 0.0
    %168 = vmatprep.subr.mxu0 0.0
    %169 = vmatpush1.msra.mxu0 0.0
    %170 = vmatprep.subr.mxu0 0.0
    %171 = vmatpush1.msra.mxu0 0.0
    %172 = vmatprep.subr.mxu0 0.0
    %173 = vmatpush1.msra.mxu0 0.0
    %174 = vmatprep.subr.mxu0 0.0
    %175 = vmatpush1.msra.mxu0 0.0
    %176 = vmatprep.subr.mxu0 0.0
    %177 = vmatpush1.msra.mxu0 0.0
    %178 = vmatprep.subr.mxu0 0.0
    %179 = vmatpush1.msra.mxu0 0.0
    %180 = vmatprep.subr.mxu0 0.0
    %181 = vmatpush1.msra.mxu0 0.0
    %182 = vmatprep.subr.mxu0 0.0
    %183 = vmatpush1.msra.mxu0 0.0
    %184 = vmatprep.subr.mxu0 0.0
    %185 = vmatpush1.msra.mxu0 %v148
    %186 = vmatprep.subr.mxu0 0.0
    %187 = vmatpush1.msra.mxu0 %v147
    %188 = vmatprep.subr.mxu0 0.0
    %189 = vmatpush1.msra.mxu0 %v146
    %190 = vmatprep.subr.mxu0 0.0
    %191 = vmatpush1.msra.mxu0 %v145
    %192 = vmatprep.subr.mxu0 0.0
    %193 = vmatpush2.msra.mxu0 0.0
    %194 = vmatprep.subr.mxu0 0.0
    %195 = vmatpush2.msra.mxu0 0.0
    %196 = vmatprep.subr.mxu0 0.0
    %197 = vmatpush2.msra.mxu0 0.0
    %198 = vmatprep.subr.mxu0 0.0
    %199 = vmatpush2.msra.mxu0 0.0
    %200 = vmatprep.subr.mxu0 0.0
    %201 = vmatpush2.msra.mxu0 0.0
    %202 = vmatprep.subr.mxu0 0.0
    %203 = vmatpush2.msra.mxu0 0.0
    %204 = vmatprep.subr.mxu0 0.0
    %205 = vmatpush2.msra.mxu0 0.0
    %206 = vmatprep.subr.mxu0 0.0
    %207 = vmatpush2.msra.mxu0 0.0
    %208 = vmatprep.subr.mxu0 0.0
    %209 = vmatpush2.msra.mxu0 0.0
    %210 = vmatprep.subr.mxu0 0.0
    %211 = vmatpush2.msra.mxu0 0.0
    %212 = vmatprep.subr.mxu0 0.0
    %213 = vmatpush2.msra.mxu0 0.0
    %214 = vmatprep.subr.mxu0 0.0
    %215 = vmatpush2.msra.mxu0 0.0
    %216 = vmatprep.subr.mxu0 0.0
    %217 = vmatpush2.msra.mxu0 0.0
    %218 = vmatprep.subr.mxu0 0.0
    %219 = vmatpush2.msra.mxu0 0.0
    %220 = vmatprep.subr.mxu0 0.0
    %221 = vmatpush2.msra.mxu0 0.0
    %222 = vmatprep.subr.mxu0 0.0
    %223 = vmatpush2.msra.mxu0 0.0
    %224 = vmatprep.mubr.f32.mxu0 0.0
    %225 = vmatmul.mubr.f32.gmra.mxu0 %v158
    %v226 = vpop.f32.mrf.mxu0
    %v227 = vadd.f32 %v154, %v226
    %v228 = vpop.f32.mrf.mxu0
    %229 = vdwg.mxu0
    %v230 = vmul.f32 %v227, 0.5
    %v231 = vmul.f32 %v227, 0.70710677
    %v232 = verf.f32.pop %v231
    %v233 = vadd.f32 %v232, 1.0
    %v234 = vmul.f32 %v230, %v233
    %v235 = vld [vmem:[%s4] sm:$0xff]
    %v236 = vld [vmem:[%s4 + $0x8] sm:$0xff]
    %v237 = vld [vmem:[%s4 + $0x10] sm:$0xff]
    %v238 = vld [vmem:[%s4 + $0x18] sm:$0xff]
    %v239 = vld [vmem:[%s4 + $0x20] sm:$0xff]
    %v240 = vld [vmem:[%s4 + $0x28] sm:$0xff]
    %v241 = vld [vmem:[%s4 + $0x30] sm:$0xff]
    %v242 = vld [vmem:[%s4 + $0x38] sm:$0xff]
    %v243 = vld [vmem:[%s4 + $0x40] sm:$0xff]
    %v244 = vld [vmem:[%s4 + $0x48] sm:$0xff]
    %v245 = vld [vmem:[%s4 + $0x50] sm:$0xff]
    %v246 = vld [vmem:[%s4 + $0x58] sm:$0xff]
    %v247 = vld [vmem:[%s4 + $0x60] sm:$0xff]
    %v248 = vld [vmem:[%s4 + $0x68] sm:$0xff]
    %v249 = vld [vmem:[%s4 + $0x70] sm:$0xff]
    %v250 = vld [vmem:[%s4 + $0x78] sm:$0xff]
    %v251 = vld [vmem:[%s5] sm:$0x1]
    %v253 = vlaneseq
    %v254 = vshrl.u32 %v253, 7
    %v255 = vsub.s32 0, %v254
    %v256 = vrot.slane %v251, %v255
    %258 = vmatprep.subr.mxu0 0.0
    %259 = vmatpush1.msra.mxu0 %v250
    %260 = vmatprep.subr.mxu0 0.0
    %261 = vmatpush1.msra.mxu0 %v249
    %262 = vmatprep.subr.mxu0 0.0
    %263 = vmatpush1.msra.mxu0 %v248
    %264 = vmatprep.subr.mxu0 0.0
    %265 = vmatpush1.msra.mxu0 %v247
    %266 = vmatprep.subr.mxu0 0.0
    %267 = vmatpush1.msra.mxu0 %v246
    %268 = vmatprep.subr.mxu0 0.0
    %269 = vmatpush1.msra.mxu0 %v245
    %270 = vmatprep.subr.mxu0 0.0
    %271 = vmatpush1.msra.mxu0 %v244
    %272 = vmatprep.subr.mxu0 0.0
    %273 = vmatpush1.msra.mxu0 %v243
    %274 = vmatprep.subr.mxu0 0.0
    %275 = vmatpush1.msra.mxu0 %v242
    %276 = vmatprep.subr.mxu0 0.0
    %277 = vmatpush1.msra.mxu0 %v241
    %278 = vmatprep.subr.mxu0 0.0
    %279 = vmatpush1.msra.mxu0 %v240
    %280 = vmatprep.subr.mxu0 0.0
    %281 = vmatpush1.msra.mxu0 %v239
    %282 = vmatprep.subr.mxu0 0.0
    %283 = vmatpush1.msra.mxu0 %v238
    %284 = vmatprep.subr.mxu0 0.0
    %285 = vmatpush1.msra.mxu0 %v237
    %286 = vmatprep.subr.mxu0 0.0
    %287 = vmatpush1.msra.mxu0 %v236
    %288 = vmatprep.subr.mxu0 0.0
    %289 = vmatpush1.msra.mxu0 %v235
    %290 = vmatprep.subr.mxu0 0.0
    %291 = vmatpush2.msra.mxu0 0.0
    %292 = vmatprep.subr.mxu0 0.0
    %293 = vmatpush2.msra.mxu0 0.0
    %294 = vmatprep.subr.mxu0 0.0
    %295 = vmatpush2.msra.mxu0 0.0
    %296 = vmatprep.subr.mxu0 0.0
    %297 = vmatpush2.msra.mxu0 0.0
    %298 = vmatprep.subr.mxu0 0.0
    %299 = vmatpush2.msra.mxu0 0.0
    %300 = vmatprep.subr.mxu0 0.0
    %301 = vmatpush2.msra.mxu0 0.0
    %302 = vmatprep.subr.mxu0 0.0
    %303 = vmatpush2.msra.mxu0 0.0
    %304 = vmatprep.subr.mxu0 0.0
    %305 = vmatpush2.msra.mxu0 0.0
    %306 = vmatprep.subr.mxu0 0.0
    %307 = vmatpush2.msra.mxu0 0.0
    %308 = vmatprep.subr.mxu0 0.0
    %309 = vmatpush2.msra.mxu0 0.0
    %310 = vmatprep.subr.mxu0 0.0
    %311 = vmatpush2.msra.mxu0 0.0
    %312 = vmatprep.subr.mxu0 0.0
    %313 = vmatpush2.msra.mxu0 0.0
    %314 = vmatprep.subr.mxu0 0.0
    %315 = vmatpush2.msra.mxu0 0.0
    %316 = vmatprep.subr.mxu0 0.0
    %317 = vmatpush2.msra.mxu0 0.0
    %318 = vmatprep.subr.mxu0 0.0
    %319 = vmatpush2.msra.mxu0 0.0
    %320 = vmatprep.subr.mxu0 0.0
    %321 = vmatpush2.msra.mxu0 0.0
    %322 = vmatprep.mubr.f32.mxu0 0.0
    %323 = vmatmul.mubr.f32.gmra.mxu0 %v234
    %v324 = vpop.f32.mrf.mxu0
    %v325 = vadd.f32 %v256, %v324
    %v326 = vpop.f32.mrf.mxu0
    %327 = vdwg.mxu0
    %328 = vst.msk [vmem:[#allocation2] sm:$0xff] %vm156, %v325
    // Predicated region
    $region26: #{tpu_custom_call.1} parent=1 // pred_check
      _
    $region27: #{tpu_custom_call.1} parent=1 // pred_check_branch
      %330 = sbr.rel (0) target = $region29
    $region28: #{tpu_custom_call.1} parent=1 // pred_region
      %s332 = ssub.s32 128, 128
      %333 = vsyncadd [#allocation3], %s332
      %s335 = sshll.u32 [#allocation2], 4
      %s336 = int_to_ptr.vmem [resolvable:$true] %s335
      %338 = dma.vmem_to_hbm [thread:$0]  %s336, 128, %s6, [#allocation3]
    $region29: #{tpu_custom_call.1} parent=1 // pred_fallthru
      _
    // Predicated region
    $region30: #{tpu_custom_call.1} parent=1 // pred_check
      _
    $region31: #{tpu_custom_call.1} parent=1 // pred_check_branch
      %340 = sbr.rel (0) target = $region33
    $region32: #{tpu_custom_call.1} parent=1 // pred_region
      %341 = dma.done [#allocation3], 128
    $region33: #{tpu_custom_call.1} parent=1 // pred_fallthru
      _
    %342 = vsyncpa [#allocation3], 1

</llo_original>
